<compile_context>
chip_gen: v7x
topology: tpu7x:2x2x1
jax: 0.10.0
libtpu: 0.0.40
codegen_flags: <defaults>
</compile_context>

<pallas_src>
import functools

import jax
import jax.numpy as jnp
from jax.experimental import pallas as pl
from jax.experimental.pallas import tpu as pltpu

EPS = 1e-6


def _round_up(n, m):
    return ((n + m - 1) // m) * m


def _pad2(a, rows, cols):
    return jnp.pad(a, ((0, rows - a.shape[0]), (0, cols - a.shape[1])))


def _vmem_capacity_bytes():
    try:
        return int(pltpu.get_tpu_info().vmem_capacity_bytes)
    except Exception:
        return 64 << 20  # conservative: v7x per-TensorCore VMEM


def _layer_norm(z, gamma, beta, d_model):
    """Torch-style LN (f32): (z - mean) / (unbiased std + eps) * gamma + beta."""
    d_pad = z.shape[-1]
    mean = jnp.sum(z, axis=-1, keepdims=True) * (1.0 / d_model)
    diff = z - mean  # two-pass variance: safer than s2 - s1*mean
    if d_pad > d_model:
        lane = jax.lax.broadcasted_iota(jnp.int32, z.shape, 1)
        diff_sq = jnp.where(lane < d_model, diff, 0.0)
    else:
        diff_sq = diff
    var = jnp.sum(diff_sq * diff_sq, axis=-1, keepdims=True) * (1.0 / (d_model - 1))
    inv = 1.0 / (jnp.sqrt(var) + EPS)  # one exact divide per row, hoisted
    return gamma.astype(jnp.float32) * (diff * inv) + beta.astype(jnp.float32)


def ffn_kernel_resident(x_ref, w1_ref, b1_ref, w2_ref, b2_ref, gamma_ref,
                        beta_ref, o_ref, *, d_model):
    """Fast path: W1/W2 fully VMEM-resident (constant index_map, 1-D row grid)."""
    x = x_ref[...]                                                 # (tm, Dp)
    h = jnp.dot(x, w1_ref[...], preferred_element_type=jnp.float32)
    h = jnp.maximum(h + b1_ref[...].astype(jnp.float32), 0.0)      # (tm, Fp)
    y = jnp.dot(h.astype(w2_ref.dtype), w2_ref[...],
                preferred_element_type=jnp.float32)                # (tm, Dp)
    # dropout is identity in eval mode.
    z = x.astype(jnp.float32) + y + b2_ref[...].astype(jnp.float32)
    o_ref[...] = _layer_norm(z, gamma_ref[...], beta_ref[...],
                             d_model).astype(o_ref.dtype)


def ffn_kernel_tiled(x_ref, w1_ref, b1_ref, w2_ref, b2_ref, gamma_ref,
                     beta_ref, o_ref, acc_ref, *, d_model, tf):
    """Fallback: d_ff tiled on an inner 'arbitrary' axis with a f32 accumulator."""
    f = pl.program_id(1)
    nf = pl.num_programs(1)

    @pl.when(f == 0)
    def _():
        acc_ref[...] = jnp.zeros_like(acc_ref)

    x = x_ref[...]                                                 # (tm, Dp)
    # b1 is one resident (1, f_pad) block; slice the current chunk in VMEM.
    b1c = b1_ref[:, pl.ds(pl.multiple_of(f * tf, 128), tf)]
    h = jnp.dot(x, w1_ref[...], preferred_element_type=jnp.float32)
    h = jnp.maximum(h + b1c.astype(jnp.float32), 0.0)              # (tm, tf)
    part = jnp.dot(h.astype(w2_ref.dtype), w2_ref[...],
                   preferred_element_type=jnp.float32)             # (tm, Dp)

    @pl.when(f < nf - 1)
    def _():
        acc_ref[...] += part

    @pl.when(f == nf - 1)
    def _():
        # Fuse the final partial product straight into the epilogue (saves a
        # full (tm, Dp) f32 acc store + reload).  Dropout = identity (eval).
        z = (x.astype(jnp.float32) + acc_ref[...] + part
             + b2_ref[...].astype(jnp.float32))
        o_ref[...] = _layer_norm(z, gamma_ref[...], beta_ref[...],
                                 d_model).astype(o_ref.dtype)


def poswise_ffn(x, w1, b1, w2, b2, gamma, beta, *, tm=512, tf=1024,
                weights_resident=None):
    """x: (B, S, D).  w1: (D, F), b1: (F,), w2: (F, D), b2: (D,), gamma/beta: (D,)."""
    assert tm % 8 == 0, "tm must be a multiple of 8 (sublane)"
    assert tf % 128 == 0, "tf must be a multiple of 128 (lane)"
    B, S, D = x.shape
    F = w1.shape[1]
    rows = B * S
    isz = jnp.dtype(x.dtype).itemsize

    d_pad = _round_up(D, 128)
    f_full = _round_up(F, 128)
    budget = int(0.85 * _vmem_capacity_bytes())

    # Row tiling.  Keep at least 2 row tiles when possible so the 'parallel'
    # rows axis can be split across v7x's two TensorCores (no effect v5e/v6e).
    tm_eff = min(tm, _round_up(rows, 8))
    if rows > 8:
        tm_eff = min(tm_eff, _round_up((rows + 1) // 2, 8))
    rows_pad = _round_up(rows, tm_eff)
    n_row = rows_pad // tm_eff

    def resident_bytes(tm_, f_):
        return (4 * tm_ * d_pad * isz                   # x + out (double-buffered)
                + 2 * (d_pad * f_ + f_ * d_pad) * isz   # W1 + W2 (double-buffered)
                + 2 * (f_ + 3 * d_pad) * isz            # b1, b2, gamma, beta
                + tm_ * f_ * (4 + isz)                  # h (f32) + cast copy
                + 3 * tm_ * d_pad * 4)                  # f32 epilogue temporaries

    def tiled_bytes(tm_, tf_, fp_):
        return (4 * tm_ * d_pad * isz                   # x + out (double-buffered)
                + 2 * (d_pad * tf_ + tf_ * d_pad) * isz  # W1/W2 chunks (x2)
                + 2 * (fp_ + 3 * d_pad) * isz           # b1 full + b2/gamma/beta
                + tm_ * tf_ * (4 + isz)                 # h (f32) + cast copy
                + tm_ * d_pad * 4                       # acc scratch
                + 3 * tm_ * d_pad * 4)                  # f32 epilogue temporaries

    if weights_resident is None:
        weights_resident = resident_bytes(tm_eff, f_full) <= budget

    # Common padded operands (lane-dense, zero-padded so reductions stay exact).
    x2 = _pad2(x.reshape(rows, D), rows_pad, d_pad)
    b2p = _pad2(b2.reshape(1, D), 1, d_pad)
    gp = _pad2(gamma.reshape(1, D), 1, d_pad)
    bp = _pad2(beta.reshape(1, D), 1, d_pad)

    if weights_resident:
        f_pad = f_full
        w1p = _pad2(w1, d_pad, f_pad)
        w2p = _pad2(w2, f_pad, d_pad)
        b1p = _pad2(b1.reshape(1, F), 1, f_pad)

        est = resident_bytes(tm_eff, f_pad)
        vmem_limit = int(min(max(est + est // 4 + (2 << 20), 32 << 20), budget))

        out2 = pl.pallas_call(
            functools.partial(ffn_kernel_resident, d_model=D),
            out_shape=jax.ShapeDtypeStruct((rows_pad, d_pad), x.dtype),
            grid_spec=pltpu.PrefetchScalarGridSpec(
                num_scalar_prefetch=0,
                grid=(n_row,),
                in_specs=[
                    pl.BlockSpec((tm_eff, d_pad), lambda i: (i, 0)),  # x tile
                    pl.BlockSpec((d_pad, f_pad), lambda i: (0, 0)),   # W1 (resident)
                    pl.BlockSpec((1, f_pad),     lambda i: (0, 0)),   # b1 (resident)
                    pl.BlockSpec((f_pad, d_pad), lambda i: (0, 0)),   # W2 (resident)
                    pl.BlockSpec((1, d_pad),     lambda i: (0, 0)),   # b2
                    pl.BlockSpec((1, d_pad),     lambda i: (0, 0)),   # gamma
                    pl.BlockSpec((1, d_pad),     lambda i: (0, 0)),   # beta
                ],
                out_specs=pl.BlockSpec((tm_eff, d_pad), lambda i: (i, 0)),
            ),
            compiler_params=pltpu.CompilerParams(
                dimension_semantics=("parallel",),
                vmem_limit_bytes=vmem_limit,
            ),
        )(x2, w1p, b1p, w2p, b2p, gp, bp)
    else:
        tf_eff = min(tf, f_full)
        f_pad = _round_up(F, tf_eff)
        # Shrink tf until the double-buffered footprint fits the VMEM budget.
        while tiled_bytes(tm_eff, tf_eff, f_pad) > budget and tf_eff > 128:
            tf_eff = max(128, (tf_eff // 2 // 128) * 128)
            f_pad = _round_up(F, tf_eff)

        w1p = _pad2(w1, d_pad, f_pad)
        w2p = _pad2(w2, f_pad, d_pad)
        b1p = _pad2(b1.reshape(1, F), 1, f_pad)

        est = tiled_bytes(tm_eff, tf_eff, f_pad)
        vmem_limit = int(min(max(est + est // 4 + (2 << 20), 32 << 20), budget))

        out2 = pl.pallas_call(
            functools.partial(ffn_kernel_tiled, d_model=D, tf=tf_eff),
            out_shape=jax.ShapeDtypeStruct((rows_pad, d_pad), x.dtype),
            grid_spec=pltpu.PrefetchScalarGridSpec(
                num_scalar_prefetch=0,
                grid=(n_row, f_pad // tf_eff),
                in_specs=[
                    pl.BlockSpec((tm_eff, d_pad), lambda i, f: (i, 0)),  # x tile
                    pl.BlockSpec((d_pad, tf_eff), lambda i, f: (0, f)),  # W1 chunk
                    pl.BlockSpec((1, f_pad),      lambda i, f: (0, 0)),  # b1 (resident)
                    pl.BlockSpec((tf_eff, d_pad), lambda i, f: (f, 0)),  # W2 chunk
                    pl.BlockSpec((1, d_pad),      lambda i, f: (0, 0)),  # b2
                    pl.BlockSpec((1, d_pad),      lambda i, f: (0, 0)),  # gamma
                    pl.BlockSpec((1, d_pad),      lambda i, f: (0, 0)),  # beta
                ],
                out_specs=pl.BlockSpec((tm_eff, d_pad), lambda i, f: (i, 0)),
                scratch_shapes=[pltpu.VMEM((tm_eff, d_pad), jnp.float32)],
            ),
            compiler_params=pltpu.CompilerParams(
                dimension_semantics=("parallel", "arbitrary"),
                vmem_limit_bytes=vmem_limit,
            ),
        )(x2, w1p, b1p, w2p, b2p, gp, bp)

    return out2[:rows, :D].reshape(B, S, D)


def reference(x, w1, b1, w2, b2, gamma, beta):
    """Pure-JAX reference mirroring the PyTorch forward (eval mode)."""
    h = jnp.maximum(jnp.einsum("bsd,df->bsf", x, w1) + b1, 0.0)
    y = jnp.einsum("bsf,fd->bsd", h, w2) + b2
    z = x + y
    mean = jnp.mean(z, axis=-1, keepdims=True)
    std = jnp.sqrt(jnp.sum((z - mean) ** 2, axis=-1, keepdims=True) / (z.shape[-1] - 1))
    return gamma * ((z - mean) / (std + EPS)) + beta


def _make_case(key, B, S, d_model, d_ff, trivial_affine=True):
    k_x, k_w1, k_b1, k_w2, k_b2, k_g, k_b = jax.random.split(key, 7)
    x = jax.random.normal(k_x, (B, S, d_model), dtype=jnp.float32)
    w1 = jax.random.normal(k_w1, (d_model, d_ff), dtype=jnp.float32) * 0.05
    b1 = jax.random.normal(k_b1, (d_ff,), dtype=jnp.float32) * 0.05
    w2 = jax.random.normal(k_w2, (d_ff, d_model), dtype=jnp.float32) * 0.05
    b2 = jax.random.normal(k_b2, (d_model,), dtype=jnp.float32) * 0.05
    if trivial_affine:
        gamma = jnp.ones((d_model,), dtype=jnp.float32)
        beta = jnp.zeros((d_model,), dtype=jnp.float32)
    else:
        gamma = 1.0 + 0.1 * jax.random.normal(k_g, (d_model,), dtype=jnp.float32)
        beta = 0.1 * jax.random.normal(k_b, (d_model,), dtype=jnp.float32)
    return x, w1, b1, w2, b2, gamma, beta


if __name__ == "__main__":
    key = jax.random.PRNGKey(0)
    k1, k2 = jax.random.split(key)

    # Case 1: original small module shapes (B=2, S=8, d_model=32, d_ff=64).
    # Weights fit VMEM -> exercises the resident fast path.
    args1 = _make_case(k1, 2, 8, 32, 64, trivial_affine=True)
    out1 = jax.block_until_ready(poswise_ffn(*args1))
    ref1 = reference(*args1)
    assert out1.shape == (2, 8, 32)
    assert jnp.allclose(out1, ref1, atol=1e-4, rtol=1e-4), "case1 mismatch vs reference"

    # Case 2: forces the F-tiled accumulator path (multi-row-tile, multi-F-step).
    args2 = _make_case(k2, 2, 64, 128, 384, trivial_affine=False)
    out2 = jax.block_until_ready(
        poswise_ffn(*args2, tm=64, tf=128, weights_resident=False))
    ref2 = reference(*args2)
    assert out2.shape == (2, 64, 128)
    assert jnp.allclose(out2, ref2, atol=2e-2, rtol=2e-2), "case2 mismatch vs reference"

    print("KERNEL_OK")
</pallas_src>

<mosaic_0001>
module attributes {stable_mosaic.version = 11 : i64} {
  func.func @ffn_kernel_resident(%arg0: i32, %arg1: memref<8x128xf32, #tpu.memory_space<vmem>>, %arg2: memref<128x128xf32, #tpu.memory_space<vmem>>, %arg3: memref<1x128xf32, #tpu.memory_space<vmem>>, %arg4: memref<128x128xf32, #tpu.memory_space<vmem>>, %arg5: memref<1x128xf32, #tpu.memory_space<vmem>>, %arg6: memref<1x128xf32, #tpu.memory_space<vmem>>, %arg7: memref<1x128xf32, #tpu.memory_space<vmem>>, %arg8: memref<8x128xf32, #tpu.memory_space<vmem>>) attributes {dimension_semantics = [#tpu.dimension_semantics<parallel>], iteration_bounds = array<i64: 2>, scalar_prefetch = 0 : i64, scratch_operands = 0 : i64, tpu.core_type = #tpu.core_type<tc>, window_params = [{transform_indices = @transform_0, window_bounds = array<i64: 8, 128>}, {pipeline_mode = #tpu.pipeline_mode<synchronous>, transform_indices = @transform_1, window_bounds = array<i64: 128, 128>}, {pipeline_mode = #tpu.pipeline_mode<synchronous>, transform_indices = @transform_2, window_bounds = array<i64: 1, 128>}, {pipeline_mode = #tpu.pipeline_mode<synchronous>, transform_indices = @transform_3, window_bounds = array<i64: 128, 128>}, {pipeline_mode = #tpu.pipeline_mode<synchronous>, transform_indices = @transform_4, window_bounds = array<i64: 1, 128>}, {pipeline_mode = #tpu.pipeline_mode<synchronous>, transform_indices = @transform_5, window_bounds = array<i64: 1, 128>}, {pipeline_mode = #tpu.pipeline_mode<synchronous>, transform_indices = @transform_6, window_bounds = array<i64: 1, 128>}, {transform_indices = @transform_7, window_bounds = array<i64: 8, 128>}]} {
    %c0 = arith.constant 0 : index
    %c0_0 = arith.constant 0 : index
    %0 = vector.load %arg1[%c0, %c0_0] : memref<8x128xf32, #tpu.memory_space<vmem>>, vector<8x128xf32>
    %c0_1 = arith.constant 0 : index
    %c0_2 = arith.constant 0 : index
    %1 = vector.load %arg2[%c0_1, %c0_2] : memref<128x128xf32, #tpu.memory_space<vmem>>, vector<128x128xf32>
    %cst = arith.constant dense<0.000000e+00> : vector<8x128xf32>
    %2 = tpu.matmul %0, %1, %cst {dimension_numbers = #tpu.dot_dimension_numbers<[1], [0], [0], [1], [0, 0, 1, 1], [], []>} : vector<8x128xf32>, vector<128x128xf32>, vector<8x128xf32> -> vector<8x128xf32>
    %c0_3 = arith.constant 0 : index
    %c0_4 = arith.constant 0 : index
    %3 = vector.load %arg3[%c0_3, %c0_4] : memref<1x128xf32, #tpu.memory_space<vmem>>, vector<1x128xf32>
    %4 = vector.broadcast %3 : vector<1x128xf32> to vector<8x128xf32>
    %5 = arith.addf %2, %4 : vector<8x128xf32>
    %cst_5 = arith.constant 0.000000e+00 : f32
    %6 = vector.broadcast %cst_5 : f32 to vector<8x128xf32>
    %7 = arith.maximumf %5, %6 : vector<8x128xf32>
    %c0_6 = arith.constant 0 : index
    %c0_7 = arith.constant 0 : index
    %8 = vector.load %arg4[%c0_6, %c0_7] : memref<128x128xf32, #tpu.memory_space<vmem>>, vector<128x128xf32>
    %cst_8 = arith.constant dense<0.000000e+00> : vector<8x128xf32>
    %9 = tpu.matmul %7, %8, %cst_8 {dimension_numbers = #tpu.dot_dimension_numbers<[1], [0], [0], [1], [0, 0, 1, 1], [], []>} : vector<8x128xf32>, vector<128x128xf32>, vector<8x128xf32> -> vector<8x128xf32>
    %10 = arith.addf %0, %9 : vector<8x128xf32>
    %c0_9 = arith.constant 0 : index
    %c0_10 = arith.constant 0 : index
    %11 = vector.load %arg5[%c0_9, %c0_10] : memref<1x128xf32, #tpu.memory_space<vmem>>, vector<1x128xf32>
    %12 = vector.broadcast %11 : vector<1x128xf32> to vector<8x128xf32>
    %13 = arith.addf %10, %12 : vector<8x128xf32>
    %c0_11 = arith.constant 0 : index
    %c0_12 = arith.constant 0 : index
    %14 = vector.load %arg6[%c0_11, %c0_12] : memref<1x128xf32, #tpu.memory_space<vmem>>, vector<1x128xf32>
    %c0_13 = arith.constant 0 : index
    %c0_14 = arith.constant 0 : index
    %15 = vector.load %arg7[%c0_13, %c0_14] : memref<1x128xf32, #tpu.memory_space<vmem>>, vector<1x128xf32>
    %cst_15 = arith.constant dense<0.000000e+00> : vector<8xf32>
    %16 = vector.multi_reduction <add>, %13, %cst_15 [1] : vector<8x128xf32> to vector<8xf32>
    %17 = vector.shape_cast %16 : vector<8xf32> to vector<8x1xf32>
    %cst_16 = arith.constant 3.125000e-02 : f32
    %18 = vector.broadcast %cst_16 : f32 to vector<8x1xf32>
    %19 = arith.mulf %17, %18 : vector<8x1xf32>
    %20 = vector.broadcast %19 : vector<8x1xf32> to vector<8x128xf32>
    %21 = arith.subf %13, %20 : vector<8x128xf32>
    %22 = tpu.iota {dimensions = array<i32: 1>} : vector<8x128xi32>
    %c32_i32 = arith.constant 32 : i32
    %23 = vector.broadcast %c32_i32 : i32 to vector<8x128xi32>
    %24 = arith.cmpi slt, %22, %23 : vector<8x128xi32>
    %cst_17 = arith.constant 0.000000e+00 : f32
    %25 = vector.broadcast %cst_17 : f32 to vector<8x128xf32>
    %26 = arith.select %24, %21, %25 : vector<8x128xi1>, vector<8x128xf32>
    %27 = arith.mulf %26, %26 : vector<8x128xf32>
    %cst_18 = arith.constant dense<0.000000e+00> : vector<8xf32>
    %28 = vector.multi_reduction <add>, %27, %cst_18 [1] : vector<8x128xf32> to vector<8xf32>
    %29 = vector.shape_cast %28 : vector<8xf32> to vector<8x1xf32>
    %cst_19 = arith.constant 0.0322580636 : f32
    %30 = vector.broadcast %cst_19 : f32 to vector<8x1xf32>
    %31 = arith.mulf %29, %30 : vector<8x1xf32>
    %32 = math.sqrt %31 : vector<8x1xf32>
    %cst_20 = arith.constant 9.99999997E-7 : f32
    %33 = vector.broadcast %cst_20 : f32 to vector<8x1xf32>
    %34 = arith.addf %32, %33 : vector<8x1xf32>
    %cst_21 = arith.constant 1.000000e+00 : f32
    %35 = vector.broadcast %cst_21 : f32 to vector<8x1xf32>
    %36 = arith.divf %35, %34 : vector<8x1xf32>
    %37 = vector.broadcast %36 : vector<8x1xf32> to vector<8x128xf32>
    %38 = arith.mulf %21, %37 : vector<8x128xf32>
    %39 = vector.broadcast %14 : vector<1x128xf32> to vector<8x128xf32>
    %40 = arith.mulf %39, %38 : vector<8x128xf32>
    %41 = vector.broadcast %15 : vector<1x128xf32> to vector<8x128xf32>
    %42 = arith.addf %40, %41 : vector<8x128xf32>
    %c0_22 = arith.constant 0 : index
    %c0_23 = arith.constant 0 : index
    %43 = vector.load %arg8[%c0_22, %c0_23] : memref<8x128xf32, #tpu.memory_space<vmem>>, vector<8x128xf32>
    tpu.vector_store %arg8[%c0_22, %c0_23], %42 {strides = array<i32>} : memref<8x128xf32, #tpu.memory_space<vmem>>, vector<8x128xf32>,
    return
  }
  func.func @transform_0(%arg0: i32) -> (i32, i32) {
    %c0_i32 = arith.constant 0 : i32
    %c0_i32_0 = arith.constant 0 : i32
    return %arg0, %c0_i32 : i32, i32
  }
  func.func @transform_1(%arg0: i32) -> (i32, i32) {
    %c0_i32 = arith.constant 0 : i32
    %c0_i32_0 = arith.constant 0 : i32
    %c0_i32_1 = arith.constant 0 : i32
    return %c0_i32, %c0_i32_0 : i32, i32
  }
  func.func @transform_2(%arg0: i32) -> (i32, i32) {
    %c0_i32 = arith.constant 0 : i32
    %c0_i32_0 = arith.constant 0 : i32
    %c0_i32_1 = arith.constant 0 : i32
    return %c0_i32, %c0_i32_0 : i32, i32
  }
  func.func @transform_3(%arg0: i32) -> (i32, i32) {
    %c0_i32 = arith.constant 0 : i32
    %c0_i32_0 = arith.constant 0 : i32
    %c0_i32_1 = arith.constant 0 : i32
    return %c0_i32, %c0_i32_0 : i32, i32
  }
  func.func @transform_4(%arg0: i32) -> (i32, i32) {
    %c0_i32 = arith.constant 0 : i32
    %c0_i32_0 = arith.constant 0 : i32
    %c0_i32_1 = arith.constant 0 : i32
    return %c0_i32, %c0_i32_0 : i32, i32
  }
  func.func @transform_5(%arg0: i32) -> (i32, i32) {
    %c0_i32 = arith.constant 0 : i32
    %c0_i32_0 = arith.constant 0 : i32
    %c0_i32_1 = arith.constant 0 : i32
    return %c0_i32, %c0_i32_0 : i32, i32
  }
  func.func @transform_6(%arg0: i32) -> (i32, i32) {
    %c0_i32 = arith.constant 0 : i32
    %c0_i32_0 = arith.constant 0 : i32
    %c0_i32_1 = arith.constant 0 : i32
    return %c0_i32, %c0_i32_0 : i32, i32
  }
  func.func @transform_7(%arg0: i32) -> (i32, i32) {
    %c0_i32 = arith.constant 0 : i32
    %c0_i32_0 = arith.constant 0 : i32
    return %arg0, %c0_i32 : i32, i32
  }
}

</mosaic_0001>

<llo_original>
// kernel: tpu_custom_call.1
$region0: #{tpu_custom_call.1}
  #allocation0 [shape = 'u32[]', space=smem, size = 0x4, offset = 0x4, fixed_abs, tag = 'smem constant byte address 0x4 - core index']
  #allocation1 [shape = 'u32[144,128]{1,0:T(1,128)}', space=vmem, size = 0x12000, scoped, tag = 'internal scratch']
  %s0 = inlined_call_operand.hbm [shape: f32[16,128], index: 0, kind: input, shape index: {}]
  %s1 = inlined_call_operand.hbm [shape: f32[128,128], index: 1, kind: input, shape index: {}]
  %s2 = inlined_call_operand.vmem [shape: f32[1,128], index: 2, kind: input, shape index: {}]
  %s3 = inlined_call_operand.hbm [shape: f32[128,128], index: 3, kind: input, shape index: {}]
  %s4 = inlined_call_operand.vmem [shape: f32[1,128], index: 4, kind: input, shape index: {}]
  %s5 = inlined_call_operand.vmem [shape: f32[1,128], index: 5, kind: input, shape index: {}]
  %s6 = inlined_call_operand.vmem [shape: f32[1,128], index: 6, kind: input, shape index: {}]
  %s7 = inlined_call_operand.hbm [shape: f32[16,128], index: 7, kind: output, shape index: {}]
  %s8 = sld [smem:[#allocation0]]
  $region73: #{tpu_custom_call.1} parent=0
    _
  %s10 = ssub.s32 1, %s8
  %s11 = scalar_select 0, %s10, %s8
  $region1: #{tpu_custom_call.1} parent=0
    #allocation2 [shape = 'u8[8192]{0}', space=vmem, size = 0x2000, scoped, tag = 'input window, operand 0']
    #allocation3 [shape = 's32[2]{0}', space=sflag, size = 0x8, scoped, tag = 'scoped memory for tpu_custom_call.1']
    #allocation4 [shape = 's32[2]{0}', space=sflag, size = 0x8, scoped, tag = 'scoped memory for tpu_custom_call.1']
    #allocation5 [shape = 'u8[65536]{0}', space=vmem, size = 0x10000, scoped, tag = 'input window, operand 1, single buffered']
    #allocation6 [shape = 's32[1]{0}', space=sflag, size = 0x4, scoped, tag = 'scoped memory for tpu_custom_call.1']
    #allocation7 [shape = 'u8[65536]{0}', space=vmem, size = 0x10000, scoped, tag = 'input window, operand 3, single buffered']
    #allocation8 [shape = 'u8[8192]{0}', space=vmem, size = 0x2000, scoped, tag = 'output window, operand 0']
    %12 = vsyncpa [#allocation3], 0
    %s13 = scalar_lea.sflag [#allocation3], 1
    %14 = vsyncpa %s13, 0
    %15 = vsyncpa [#allocation6], 0
    %16 = vsyncpa [#allocation4], 0
    %s17 = scalar_lea.sflag [#allocation4], 1
    %18 = vsyncpa %s17, 0
    loop: start=0, step=1, limit=4
    $region2: #{tpu_custom_call.1} parent=1 // loop_pre_header
      _
    $region3: #{tpu_custom_call.1} parent=1 // loop_header
      %s20 = sphi 0, %s24
      %p21 = scmp.ge.s32.totalorder %s20, 4
      %s30 = sphi 0, %s32
      %s33 = sphi 0, %s30
      %s34 = sphi 0, %s33
      %s50 = sphi 0, %s34
      %s54 = sphi 0, %s54
      %s56 = sphi 0, %s54
      %s57 = sphi 0, %s56
      %s71 = sphi 0, %s57
      %s75 = sphi 0, %s75
      %s77 = sphi 0, %s75
      %s78 = sphi 0, %s77
      %s92 = sphi 0, %s78
      %s96 = sphi 0, %s96
      %s98 = sphi 0, %s96
      %s99 = sphi 0, %s98
      %s113 = sphi 0, %s99
      %s117 = sphi 0, %s117
      %s119 = sphi 0, %s117
      %s120 = sphi 0, %s119
      %s134 = sphi 0, %s120
      %s138 = sphi 0, %s138
      %s140 = sphi 0, %s138
      %s141 = sphi 0, %s140
      %s155 = sphi 0, %s141
      %s159 = sphi 0, %s159
      %s161 = sphi 0, %s159
      %s162 = sphi 0, %s161
      %s176 = sphi 0, %s162
      %s182 = sphi 0, %s184
      %s185 = sphi 0, %s182
      %s186 = sphi 0, %s185
      %s202 = sphi 0, %s186
    $region4: #{tpu_custom_call.1} parent=1 // loop_header_branch
      %23 = sbr.rel (%p21) target = $region8
    $region5: #{tpu_custom_call.1} parent=1 // loop_body
      %s25 = ssub.s32 %s20, 1
      %s26 = ssub.s32 %s20, 2
      %s27 = sadd.s32 %s20, 1
      %s28 = ssub.s32 %s20, %s27
      %p29 = scmp.eq.s32.totalorder %s28, 0
      %s31 = sadd.s32 %s30, 1
      %s32 = scalar_select %p29, %s30, %s31
      %p35 = pneg %p29
      %p36 = scmp.eq.s32.totalorder %s20, 1
      %p37 = por %p35, %p36
      %p38 = scmp.ne.s32.totalorder %s30, %s33
      %p39 = scmp.eq.s32.totalorder %s20, 0
      %p40 = por %p38, %p39
      %p41 = scmp.ne.s32.totalorder %s30, %s33
      %p42 = scmp.eq.s32.totalorder %s25, 1
      %p43 = por %p41, %p42
      %p44 = scmp.ne.s32.totalorder %s33, %s34
      %p45 = scmp.eq.s32.totalorder %s25, 0
      %p46 = por %p44, %p45
      %p47 = scmp.ne.s32.totalorder %s33, %s34
      %p48 = scmp.eq.s32.totalorder %s26, 1
      %p49 = por %p47, %p48
      %p51 = scmp.ne.s32.totalorder %s34, %s50
      %p52 = scmp.eq.s32.totalorder %s26, 0
      %p53 = por %p51, %p52
      %s55 = sadd.s32 %s54, 1
      %p58 = scmp.eq.s32.totalorder %s20, 1
      %p59 = scmp.ne.s32.totalorder %s54, %s56
      %p60 = scmp.eq.s32.totalorder %s20, 0
      %p61 = por %p59, %p60
      %p62 = scmp.ne.s32.totalorder %s54, %s56
      %p63 = scmp.eq.s32.totalorder %s25, 1
      %p64 = por %p62, %p63
      %p65 = scmp.ne.s32.totalorder %s56, %s57
      %p66 = scmp.eq.s32.totalorder %s25, 0
      %p67 = por %p65, %p66
      %p68 = scmp.ne.s32.totalorder %s56, %s57
      %p69 = scmp.eq.s32.totalorder %s26, 1
      %p70 = por %p68, %p69
      %p72 = scmp.ne.s32.totalorder %s57, %s71
      %p73 = scmp.eq.s32.totalorder %s26, 0
      %p74 = por %p72, %p73
      %s76 = sadd.s32 %s75, 1
      %p79 = scmp.eq.s32.totalorder %s20, 1
      %p80 = scmp.ne.s32.totalorder %s75, %s77
      %p81 = scmp.eq.s32.totalorder %s20, 0
      %p82 = por %p80, %p81
      %p83 = scmp.ne.s32.totalorder %s75, %s77
      %p84 = scmp.eq.s32.totalorder %s25, 1
      %p85 = por %p83, %p84
      %p86 = scmp.ne.s32.totalorder %s77, %s78
      %p87 = scmp.eq.s32.totalorder %s25, 0
      %p88 = por %p86, %p87
      %p89 = scmp.ne.s32.totalorder %s77, %s78
      %p90 = scmp.eq.s32.totalorder %s26, 1
      %p91 = por %p89, %p90
      %p93 = scmp.ne.s32.totalorder %s78, %s92
      %p94 = scmp.eq.s32.totalorder %s26, 0
      %p95 = por %p93, %p94
      %s97 = sadd.s32 %s96, 1
      %p100 = scmp.eq.s32.totalorder %s20, 1
      %p101 = scmp.ne.s32.totalorder %s96, %s98
      %p102 = scmp.eq.s32.totalorder %s20, 0
      %p103 = por %p101, %p102
      %p104 = scmp.ne.s32.totalorder %s96, %s98
      %p105 = scmp.eq.s32.totalorder %s25, 1
      %p106 = por %p104, %p105
      %p107 = scmp.ne.s32.totalorder %s98, %s99
      %p108 = scmp.eq.s32.totalorder %s25, 0
      %p109 = por %p107, %p108
      %p110 = scmp.ne.s32.totalorder %s98, %s99
      %p111 = scmp.eq.s32.totalorder %s26, 1
      %p112 = por %p110, %p111
      %p114 = scmp.ne.s32.totalorder %s99, %s113
      %p115 = scmp.eq.s32.totalorder %s26, 0
      %p116 = por %p114, %p115
      %s118 = sadd.s32 %s117, 1
      %p121 = scmp.eq.s32.totalorder %s20, 1
      %p122 = scmp.ne.s32.totalorder %s117, %s119
      %p123 = scmp.eq.s32.totalorder %s20, 0
      %p124 = por %p122, %p123
      %p125 = scmp.ne.s32.totalorder %s117, %s119
      %p126 = scmp.eq.s32.totalorder %s25, 1
      %p127 = por %p125, %p126
      %p128 = scmp.ne.s32.totalorder %s119, %s120
      %p129 = scmp.eq.s32.totalorder %s25, 0
      %p130 = por %p128, %p129
      %p131 = scmp.ne.s32.totalorder %s119, %s120
      %p132 = scmp.eq.s32.totalorder %s26, 1
      %p133 = por %p131, %p132
      %p135 = scmp.ne.s32.totalorder %s120, %s134
      %p136 = scmp.eq.s32.totalorder %s26, 0
      %p137 = por %p135, %p136
      %s139 = sadd.s32 %s138, 1
      %p142 = scmp.eq.s32.totalorder %s20, 1
      %p143 = scmp.ne.s32.totalorder %s138, %s140
      %p144 = scmp.eq.s32.totalorder %s20, 0
      %p145 = por %p143, %p144
      %p146 = scmp.ne.s32.totalorder %s138, %s140
      %p147 = scmp.eq.s32.totalorder %s25, 1
      %p148 = por %p146, %p147
      %p149 = scmp.ne.s32.totalorder %s140, %s141
      %p150 = scmp.eq.s32.totalorder %s25, 0
      %p151 = por %p149, %p150
      %p152 = scmp.ne.s32.totalorder %s140, %s141
      %p153 = scmp.eq.s32.totalorder %s26, 1
      %p154 = por %p152, %p153
      %p156 = scmp.ne.s32.totalorder %s141, %s155
      %p157 = scmp.eq.s32.totalorder %s26, 0
      %p158 = por %p156, %p157
      %s160 = sadd.s32 %s159, 1
      %p163 = scmp.eq.s32.totalorder %s20, 1
      %p164 = scmp.ne.s32.totalorder %s159, %s161
      %p165 = scmp.eq.s32.totalorder %s20, 0
      %p166 = por %p164, %p165
      %p167 = scmp.ne.s32.totalorder %s159, %s161
      %p168 = scmp.eq.s32.totalorder %s25, 1
      %p169 = por %p167, %p168
      %p170 = scmp.ne.s32.totalorder %s161, %s162
      %p171 = scmp.eq.s32.totalorder %s25, 0
      %p172 = por %p170, %p171
      %p173 = scmp.ne.s32.totalorder %s161, %s162
      %p174 = scmp.eq.s32.totalorder %s26, 1
      %p175 = por %p173, %p174
      %p177 = scmp.ne.s32.totalorder %s162, %s176
      %p178 = scmp.eq.s32.totalorder %s26, 0
      %p179 = por %p177, %p178
      %s180 = ssub.s32 %s20, %s27
      %p181 = scmp.eq.s32.totalorder %s180, 0
      %s183 = sadd.s32 %s182, 1
      %s184 = scalar_select %p181, %s182, %s183
      %p187 = pneg %p181
      %p188 = scmp.eq.s32.totalorder %s20, 1
      %p189 = por %p187, %p188
      %p190 = scmp.ne.s32.totalorder %s182, %s185
      %p191 = scmp.eq.s32.totalorder %s20, 0
      %p192 = por %p190, %p191
      %p193 = scmp.ne.s32.totalorder %s182, %s185
      %p194 = scmp.eq.s32.totalorder %s25, 1
      %p195 = por %p193, %p194
      %p196 = scmp.ne.s32.totalorder %s185, %s186
      %p197 = scmp.eq.s32.totalorder %s25, 0
      %p198 = por %p196, %p197
      %p199 = scmp.ne.s32.totalorder %s185, %s186
      %p200 = scmp.eq.s32.totalorder %s26, 1
      %p201 = por %p199, %p200
      %p203 = scmp.ne.s32.totalorder %s186, %s202
      %p204 = scmp.eq.s32.totalorder %s26, 0
      %p205 = por %p203, %p204
      %p206 = scmp.le.s32.totalorder 1, %s20
      %p207 = scmp.lt.s32.totalorder %s20, 3
      %p208 = pnand %p206, %p207
      %p209 = pneg %p208
      // Predicated region
      $region9: #{tpu_custom_call.1} parent=5 // pred_check
        _
      $region10: #{tpu_custom_call.1} parent=5 // pred_check_branch
        %211 = sbr.rel (%p208) target = $region12
      $region11: #{tpu_custom_call.1} parent=5 // pred_region
        %s212 = ssub.s32 %s20, 1
        // Predicated region
        $region13: #{tpu_custom_call.1} parent=11 // pred_check
          %p213 = pneg %p67
        $region14: #{tpu_custom_call.1} parent=11 // pred_check_branch
          %215 = sbr.rel (%p213) target = $region16
        $region15: #{tpu_custom_call.1} parent=11 // pred_region
          %s217 = ssub.s32 2048, 2048
          %218 = vsyncadd [#allocation6], %s217
          %s219 = sshll.u32 [#allocation5], 4
          %s220 = int_to_ptr.vmem [resolvable:$true] %s219
          %225 = dma.hbm_to_vmem [thread:$0]  %s1, 2048, %s220, [#allocation6], 128, 128, 8
        $region16: #{tpu_custom_call.1} parent=11 // pred_fallthru
          _
        // Predicated region
        $region17: #{tpu_custom_call.1} parent=11 // pred_check
          %p226 = pneg %p88
        $region18: #{tpu_custom_call.1} parent=11 // pred_check_branch
          %228 = sbr.rel (%p226) target = $region20
        $region19: #{tpu_custom_call.1} parent=11 // pred_region
          _
        $region20: #{tpu_custom_call.1} parent=11 // pred_fallthru
          _
        // Predicated region
        $region21: #{tpu_custom_call.1} parent=11 // pred_check
          %p229 = pneg %p109
        $region22: #{tpu_custom_call.1} parent=11 // pred_check_branch
          %231 = sbr.rel (%p229) target = $region24
        $region23: #{tpu_custom_call.1} parent=11 // pred_region
          %s233 = ssub.s32 2048, 2048
          %234 = vsyncadd [#allocation6], %s233
          %s235 = sshll.u32 [#allocation7], 4
          %s236 = int_to_ptr.vmem [resolvable:$true] %s235
          %241 = dma.hbm_to_vmem [thread:$0]  %s3, 2048, %s236, [#allocation6], 128, 128, 8
        $region24: #{tpu_custom_call.1} parent=11 // pred_fallthru
          _
        // Predicated region
        $region25: #{tpu_custom_call.1} parent=11 // pred_check
          %p242 = pneg %p130
        $region26: #{tpu_custom_call.1} parent=11 // pred_check_branch
          %244 = sbr.rel (%p242) target = $region28
        $region27: #{tpu_custom_call.1} parent=11 // pred_region
          _
        $region28: #{tpu_custom_call.1} parent=11 // pred_fallthru
          _
        // Predicated region
        $region29: #{tpu_custom_call.1} parent=11 // pred_check
          %p245 = pneg %p151
        $region30: #{tpu_custom_call.1} parent=11 // pred_check_branch
          %247 = sbr.rel (%p245) target = $region32
        $region31: #{tpu_custom_call.1} parent=11 // pred_region
          _
        $region32: #{tpu_custom_call.1} parent=11 // pred_fallthru
          _
        // Predicated region
        $region33: #{tpu_custom_call.1} parent=11 // pred_check
          %p248 = pneg %p172
        $region34: #{tpu_custom_call.1} parent=11 // pred_check_branch
          %250 = sbr.rel (%p248) target = $region36
        $region35: #{tpu_custom_call.1} parent=11 // pred_region
          _
        $region36: #{tpu_custom_call.1} parent=11 // pred_fallthru
          _
      $region12: #{tpu_custom_call.1} parent=5 // pred_fallthru
        _
      %p251 = scmp.lt.s32.totalorder %s20, 2
      // Predicated region
      $region37: #{tpu_custom_call.1} parent=5 // pred_check
        %p252 = pneg %p251
      $region38: #{tpu_custom_call.1} parent=5 // pred_check_branch
        %254 = sbr.rel (%p252) target = $region40
      $region39: #{tpu_custom_call.1} parent=5 // pred_region
        // Predicated region
        $region41: #{tpu_custom_call.1} parent=39 // pred_check
          %p255 = pneg %p40
        $region42: #{tpu_custom_call.1} parent=39 // pred_check_branch
          %257 = sbr.rel (%p255) target = $region44
        $region43: #{tpu_custom_call.1} parent=39 // pred_region
          %s258 = sand.u32 %s30, 1
          %s259 = scalar_lea.sflag [#allocation3], %s258
          %s260 = sand.u32 %s30, 1
          %s261 = smul.addr %s260, 8
          %s262 = scalar_lea.vmem [#allocation2], %s261
          %s264 = ssub.s32 128, 128
          %265 = vsyncadd %s259, %s264
          %s266 = smul.addr %s20, 128
          %s267 = scalar_lea.hbm %s0, %s266
          %s269 = sshll.u32 %s262, 4
          %s270 = int_to_ptr.vmem [resolvable:$true] %s269
          %272 = dma.hbm_to_vmem [thread:$0]  %s267, 128, %s270, %s259
        $region44: #{tpu_custom_call.1} parent=39 // pred_fallthru
          _
      $region40: #{tpu_custom_call.1} parent=5 // pred_fallthru
        _
      %p273 = scmp.le.s32.totalorder 1, %s20
      %p274 = scmp.lt.s32.totalorder %s20, 3
      %p275 = pnand %p273, %p274
      %p276 = pneg %p275
      // Predicated region
      $region45: #{tpu_custom_call.1} parent=5 // pred_check
        _
      $region46: #{tpu_custom_call.1} parent=5 // pred_check_branch
        %278 = sbr.rel (%p275) target = $region48
      $region47: #{tpu_custom_call.1} parent=5 // pred_region
        %s279 = ssub.s32 %s20, 1
        %s280 = sand.u32 %s33, 1
        %s281 = scalar_lea.sflag [#allocation3], %s280
        %s282 = sand.u32 %s33, 1
        %s283 = smul.addr %s282, 8
        %s284 = scalar_lea.vmem [#allocation2], %s283
        // Predicated region
        $region49: #{tpu_custom_call.1} parent=47 // pred_check
          %p285 = pneg %p46
        $region50: #{tpu_custom_call.1} parent=47 // pred_check_branch
          %287 = sbr.rel (%p285) target = $region52
        $region51: #{tpu_custom_call.1} parent=47 // pred_region
          %288 = dma.done %s281, 128
        $region52: #{tpu_custom_call.1} parent=47 // pred_fallthru
          _
        // Predicated region
        $region53: #{tpu_custom_call.1} parent=47 // pred_check
          %p289 = pneg %p67
        $region54: #{tpu_custom_call.1} parent=47 // pred_check_branch
          %291 = sbr.rel (%p289) target = $region56
        $region55: #{tpu_custom_call.1} parent=47 // pred_region
          %292 = dma.done [#allocation6], 2048
        $region56: #{tpu_custom_call.1} parent=47 // pred_fallthru
          _
        // Predicated region
        $region57: #{tpu_custom_call.1} parent=47 // pred_check
          %p293 = pneg %p109
        $region58: #{tpu_custom_call.1} parent=47 // pred_check_branch
          %295 = sbr.rel (%p293) target = $region60
        $region59: #{tpu_custom_call.1} parent=47 // pred_region
          %296 = dma.done [#allocation6], 2048
        $region60: #{tpu_custom_call.1} parent=47 // pred_fallthru
          _
        %s297 = sand.u32 %s33, 1
        %s298 = scalar_lea.sflag [#allocation3], %s297
        %s299 = sand.u32 %s33, 1
        %s300 = smul.addr %s299, 8
        %s301 = scalar_lea.vmem [#allocation2], %s300
        %p302 = pneg %p46
        %p303 = pneg %p43
        %p304 = pneg %p67
        %p305 = pneg %p64
        %p306 = pneg %p88
        %p307 = pneg %p85
        %p308 = pneg %p109
        %p309 = pneg %p106
        %p310 = pneg %p130
        %p311 = pneg %p127
        %p312 = pneg %p151
        %p313 = pneg %p148
        %p314 = pneg %p172
        %p315 = pneg %p169
        %p316 = pneg %p198
        %p317 = pneg %p195
        %s318 = sand.u32 %s185, 1
        %s319 = scalar_lea.sflag [#allocation4], %s318
        %s320 = sand.u32 %s185, 1
        %s321 = smul.addr %s320, 8
        %s322 = scalar_lea.vmem [#allocation8], %s321
        %v323 = vld [vmem:[%s284] sm:$0xff]
        %v324 = vld [vmem:[#allocation5] sm:$0xff]
        %v325 = vld [vmem:[#allocation5 + $0x8] sm:$0xff]
        %v326 = vld [vmem:[#allocation5 + $0x10] sm:$0xff]
        %v327 = vld [vmem:[#allocation5 + $0x18] sm:$0xff]
        %v328 = vld [vmem:[#allocation5 + $0x20] sm:$0xff]
        %v329 = vld [vmem:[#allocation5 + $0x28] sm:$0xff]
        %v330 = vld [vmem:[#allocation5 + $0x30] sm:$0xff]
        %v331 = vld [vmem:[#allocation5 + $0x38] sm:$0xff]
        %v332 = vld [vmem:[#allocation5 + $0x40] sm:$0xff]
        %v333 = vld [vmem:[#allocation5 + $0x48] sm:$0xff]
        %v334 = vld [vmem:[#allocation5 + $0x50] sm:$0xff]
        %v335 = vld [vmem:[#allocation5 + $0x58] sm:$0xff]
        %v336 = vld [vmem:[#allocation5 + $0x60] sm:$0xff]
        %v337 = vld [vmem:[#allocation5 + $0x68] sm:$0xff]
        %v338 = vld [vmem:[#allocation5 + $0x70] sm:$0xff]
        %v339 = vld [vmem:[#allocation5 + $0x78] sm:$0xff]
        %v340 = vld [vmem:[%s2] sm:$0x1]
        %v342 = vlaneseq
        %v343 = vshrl.u32 %v342, 7
        %v344 = vsub.s32 0, %v343
        %v345 = vrot.slane %v340, %v344
        %347 = vmatprep.subr.mxu0 0.0
        %348 = vmatpush1.msra.mxu0 %v324
        %349 = vmatprep.subr.mxu0 0.0
        %350 = vmatpush1.msra.mxu0 %v325
        %351 = vmatprep.subr.mxu0 0.0
        %352 = vmatpush1.msra.mxu0 %v326
        %353 = vmatprep.subr.mxu0 0.0
        %354 = vmatpush1.msra.mxu0 %v327
        %355 = vmatprep.subr.mxu0 0.0
        %356 = vmatpush1.msra.mxu0 %v328
        %357 = vmatprep.subr.mxu0 0.0
        %358 = vmatpush1.msra.mxu0 %v329
        %359 = vmatprep.subr.mxu0 0.0
        %360 = vmatpush1.msra.mxu0 %v330
        %361 = vmatprep.subr.mxu0 0.0
        %362 = vmatpush1.msra.mxu0 %v331
        %363 = vmatprep.subr.mxu0 0.0
        %364 = vmatpush1.msra.mxu0 %v332
        %365 = vmatprep.subr.mxu0 0.0
        %366 = vmatpush1.msra.mxu0 %v333
        %367 = vmatprep.subr.mxu0 0.0
        %368 = vmatpush1.msra.mxu0 %v334
        %369 = vmatprep.subr.mxu0 0.0
        %370 = vmatpush1.msra.mxu0 %v335
        %371 = vmatprep.subr.mxu0 0.0
        %372 = vmatpush1.msra.mxu0 %v336
        %373 = vmatprep.subr.mxu0 0.0
        %374 = vmatpush1.msra.mxu0 %v337
        %375 = vmatprep.subr.mxu0 0.0
        %376 = vmatpush1.msra.mxu0 %v338
        %377 = vmatprep.subr.mxu0 0.0
        %378 = vmatpush1.msra.mxu0 %v339
        %379 = vmatprep.subr.mxu0 0.0
        %380 = vmatpush1.msra.mxu0 0.0
        %381 = vmatprep.subr.mxu0 0.0
        %382 = vmatpush1.msra.mxu0 0.0
        %383 = vmatprep.subr.mxu0 0.0
        %384 = vmatpush1.msra.mxu0 0.0
        %385 = vmatprep.subr.mxu0 0.0
        %386 = vmatpush1.msra.mxu0 0.0
        %387 = vmatprep.subr.mxu0 0.0
        %388 = vmatpush1.msra.mxu0 0.0
        %389 = vmatprep.subr.mxu0 0.0
        %390 = vmatpush1.msra.mxu0 0.0
        %391 = vmatprep.subr.mxu0 0.0
        %392 = vmatpush1.msra.mxu0 0.0
        %393 = vmatprep.subr.mxu0 0.0
        %394 = vmatpush1.msra.mxu0 0.0
        %395 = vmatprep.subr.mxu0 0.0
        %396 = vmatpush1.msra.mxu0 0.0
        %397 = vmatprep.subr.mxu0 0.0
        %398 = vmatpush1.msra.mxu0 0.0
        %399 = vmatprep.subr.mxu0 0.0
        %400 = vmatpush1.msra.mxu0 0.0
        %401 = vmatprep.subr.mxu0 0.0
        %402 = vmatpush1.msra.mxu0 0.0
        %403 = vmatprep.subr.mxu0 0.0
        %404 = vmatpush1.msra.mxu0 0.0
        %405 = vmatprep.subr.mxu0 0.0
        %406 = vmatpush1.msra.mxu0 0.0
        %407 = vmatprep.subr.mxu0 0.0
        %408 = vmatpush1.msra.mxu0 0.0
        %409 = vmatprep.subr.mxu0 0.0
        %410 = vmatpush1.msra.mxu0 0.0
        %411 = vmatprep.mubr.f32.mxu0 0.0
        %412 = vmatmul.mubr.f32.gmra.mrb[0].mxu0 %v323
        %v413 = vpop.f32.mrb[0].mxu0
        %v414 = vadd.f32 %v345, %v413
        %v415 = vpop.f32.mrb[0].mxu0
        %416 = vdwg.mxu0
        %v417 = vmax.f32 %v414, 0.0
        %v418 = vld [vmem:[#allocation7] sm:$0xff]
        %v419 = vld [vmem:[#allocation7 + $0x8] sm:$0xff]
        %v420 = vld [vmem:[#allocation7 + $0x10] sm:$0xff]
        %v421 = vld [vmem:[#allocation7 + $0x18] sm:$0xff]
        %v422 = vld [vmem:[#allocation7 + $0x20] sm:$0xff]
        %v423 = vld [vmem:[#allocation7 + $0x28] sm:$0xff]
        %v424 = vld [vmem:[#allocation7 + $0x30] sm:$0xff]
        %v425 = vld [vmem:[#allocation7 + $0x38] sm:$0xff]
        %v426 = vld [vmem:[#allocation7 + $0x40] sm:$0xff]
        %v427 = vld [vmem:[#allocation7 + $0x48] sm:$0xff]
        %v428 = vld [vmem:[#allocation7 + $0x50] sm:$0xff]
        %v429 = vld [vmem:[#allocation7 + $0x58] sm:$0xff]
        %v430 = vld [vmem:[#allocation7 + $0x60] sm:$0xff]
        %v431 = vld [vmem:[#allocation7 + $0x68] sm:$0xff]
        %v432 = vld [vmem:[#allocation7 + $0x70] sm:$0xff]
        %v433 = vld [vmem:[#allocation7 + $0x78] sm:$0xff]
        %434 = vmatprep.subr.mxu0 0.0
        %435 = vmatpush1.msra.mxu0 %v418
        %436 = vmatprep.subr.mxu0 0.0
        %437 = vmatpush1.msra.mxu0 %v419
        %438 = vmatprep.subr.mxu0 0.0
        %439 = vmatpush1.msra.mxu0 %v420
        %440 = vmatprep.subr.mxu0 0.0
        %441 = vmatpush1.msra.mxu0 %v421
        %442 = vmatprep.subr.mxu0 0.0
        %443 = vmatpush1.msra.mxu0 %v422
        %444 = vmatprep.subr.mxu0 0.0
        %445 = vmatpush1.msra.mxu0 %v423
        %446 = vmatprep.subr.mxu0 0.0
        %447 = vmatpush1.msra.mxu0 %v424
        %448 = vmatprep.subr.mxu0 0.0
        %449 = vmatpush1.msra.mxu0 %v425
        %450 = vmatprep.subr.mxu0 0.0
        %451 = vmatpush1.msra.mxu0 %v426
        %452 = vmatprep.subr.mxu0 0.0
        %453 = vmatpush1.msra.mxu0 %v427
        %454 = vmatprep.subr.mxu0 0.0
        %455 = vmatpush1.msra.mxu0 %v428
        %456 = vmatprep.subr.mxu0 0.0
        %457 = vmatpush1.msra.mxu0 %v429
        %458 = vmatprep.subr.mxu0 0.0
        %459 = vmatpush1.msra.mxu0 %v430
        %460 = vmatprep.subr.mxu0 0.0
        %461 = vmatpush1.msra.mxu0 %v431
        %462 = vmatprep.subr.mxu0 0.0
        %463 = vmatpush1.msra.mxu0 %v432
        %464 = vmatprep.subr.mxu0 0.0
        %465 = vmatpush1.msra.mxu0 %v433
        %466 = vmatprep.subr.mxu0 0.0
        %467 = vmatpush1.msra.mxu0 0.0
        %468 = vmatprep.subr.mxu0 0.0
        %469 = vmatpush1.msra.mxu0 0.0
        %470 = vmatprep.subr.mxu0 0.0
        %471 = vmatpush1.msra.mxu0 0.0
        %472 = vmatprep.subr.mxu0 0.0
        %473 = vmatpush1.msra.mxu0 0.0
        %474 = vmatprep.subr.mxu0 0.0
        %475 = vmatpush1.msra.mxu0 0.0
        %476 = vmatprep.subr.mxu0 0.0
        %477 = vmatpush1.msra.mxu0 0.0
        %478 = vmatprep.subr.mxu0 0.0
        %479 = vmatpush1.msra.mxu0 0.0
        %480 = vmatprep.subr.mxu0 0.0
        %481 = vmatpush1.msra.mxu0 0.0
        %482 = vmatprep.subr.mxu0 0.0
        %483 = vmatpush1.msra.mxu0 0.0
        %484 = vmatprep.subr.mxu0 0.0
        %485 = vmatpush1.msra.mxu0 0.0
        %486 = vmatprep.subr.mxu0 0.0
        %487 = vmatpush1.msra.mxu0 0.0
        %488 = vmatprep.subr.mxu0 0.0
        %489 = vmatpush1.msra.mxu0 0.0
        %490 = vmatprep.subr.mxu0 0.0
        %491 = vmatpush1.msra.mxu0 0.0
        %492 = vmatprep.subr.mxu0 0.0
        %493 = vmatpush1.msra.mxu0 0.0
        %494 = vmatprep.subr.mxu0 0.0
        %495 = vmatpush1.msra.mxu0 0.0
        %496 = vmatprep.subr.mxu0 0.0
        %497 = vmatpush1.msra.mxu0 0.0
        %498 = vmatprep.mubr.f32.mxu0 0.0
        %499 = vmatmul.mubr.f32.gmra.mrb[0].mxu0 %v417
        %v500 = vpop.f32.mrb[0].mxu0
        %v501 = vadd.f32 0.0, %v500
        %v502 = vpop.f32.mrb[0].mxu0
        %503 = vdwg.mxu0
        %v504 = vadd.f32 %v323, %v501
        %v505 = vld [vmem:[%s4] sm:$0x1]
        %v507 = vlaneseq
        %v508 = vshrl.u32 %v507, 7
        %v509 = vsub.s32 0, %v508
        %v510 = vrot.slane %v505, %v509
        %v512 = vadd.f32 %v504, %v510
        %v513 = vld [vmem:[%s5] sm:$0x1]
        %v514 = vld [vmem:[%s6] sm:$0x1]
        %515 = vadd.xlane.f32.xlu0 %v512
        %v516 = vpop.xlane.xlu0 %515
        %v517 = vmul.f32 %v516, 0.03125
        %v518 = vsub.f32 %v512, %v517
        %v519 = vlaneseq
        %v520 = vand.u32 %v519, 127
        %vm521 = vcmp.lt.s32.totalorder %v520, 32
        %v522 = vsel %vm521, %v518, 0.0
        %v523 = vmul.f32 %v522, %v522
        %524 = vadd.xlane.f32.xlu0 %v523
        %v525 = vpop.xlane.xlu0 %524
        %v526 = vmul.f32 %v525, 0.032258064
        %v527 = vrsqrt.pop %v526
        %v528 = vmul.f32 %v526, %v527
        %vm529 = vcmp.eq.f32.partialorder %v526, inf
        %v530 = vsel %vm529, %v526, %v528
        %vm531 = vcmp.eq.f32.partialorder %v526, 0.0
        %v532 = vand.u32 %v526, 2147483648
        %v533 = vsel %vm531, %v532, %v530
        %v534 = vadd.f32 %v533, 1e-06
        %v535 = vrcp.pop %v534
        %v536 = vmul.f32 1.0, %v535
        %v537 = vmul.f32 %v518, %v536
        %v539 = vlaneseq
        %v540 = vshrl.u32 %v539, 7
        %v541 = vsub.s32 0, %v540
        %v542 = vrot.slane %v513, %v541
        %v544 = vmul.f32 %v542, %v537
        %v546 = vlaneseq
        %v547 = vshrl.u32 %v546, 7
        %v548 = vsub.s32 0, %v547
        %v549 = vrot.slane %v514, %v548
        %v551 = vadd.f32 %v544, %v549
        %552 = vst [vmem:[%s322] sm:$0xff] %v551
        %s553 = sand.u32 %s185, 1
        %s554 = scalar_lea.sflag [#allocation4], %s553
        %s555 = sand.u32 %s185, 1
        %s556 = smul.addr %s555, 8
        %s557 = scalar_lea.vmem [#allocation8], %s556
        // Predicated region
        $region61: #{tpu_custom_call.1} parent=47 // pred_check
          %p558 = pneg %p195
        $region62: #{tpu_custom_call.1} parent=47 // pred_check_branch
          %560 = sbr.rel (%p558) target = $region64
        $region63: #{tpu_custom_call.1} parent=47 // pred_region
          %s562 = ssub.s32 128, 128
          %563 = vsyncadd %s554, %s562
          %s564 = smul.addr %s25, 128
          %s565 = scalar_lea.hbm %s7, %s564
          %s567 = sshll.u32 %s557, 4
          %s568 = int_to_ptr.vmem [resolvable:$true] %s567
          %570 = dma.vmem_to_hbm [thread:$0]  %s568, 128, %s565, %s554
        $region64: #{tpu_custom_call.1} parent=47 // pred_fallthru
          _
      $region48: #{tpu_custom_call.1} parent=5 // pred_fallthru
        _
      %p571 = scmp.le.s32.totalorder 2, %s20
      // Predicated region
      $region65: #{tpu_custom_call.1} parent=5 // pred_check
        %p572 = pneg %p571
      $region66: #{tpu_custom_call.1} parent=5 // pred_check_branch
        %574 = sbr.rel (%p572) target = $region68
      $region67: #{tpu_custom_call.1} parent=5 // pred_region
        %s575 = ssub.s32 %s20, 2
        // Predicated region
        $region69: #{tpu_custom_call.1} parent=67 // pred_check
          %p576 = pneg %p201
        $region70: #{tpu_custom_call.1} parent=67 // pred_check_branch
          %578 = sbr.rel (%p576) target = $region72
        $region71: #{tpu_custom_call.1} parent=67 // pred_region
          %s579 = sand.u32 %s186, 1
          %s580 = scalar_lea.sflag [#allocation4], %s579
          %s581 = sand.u32 %s186, 1
          %s582 = smul.addr %s581, 8
          %s583 = scalar_lea.vmem [#allocation8], %s582
          %584 = dma.done %s580, 128
        $region72: #{tpu_custom_call.1} parent=67 // pred_fallthru
          _
      $region68: #{tpu_custom_call.1} parent=5 // pred_fallthru
        _
    $region6: #{tpu_custom_call.1} parent=1 // loop_footer
      %s24 = sadd.s32 1, %s20
    $region7: #{tpu_custom_call.1} parent=1 // loop_footer_branch
      %19 = sbr.rel target = $region3
    $region8: #{tpu_custom_call.1} parent=1 // loop_exit
      _
    %585 = vsyncpa [#allocation3], 1
    %s586 = scalar_lea.sflag [#allocation3], 1
    %587 = vsyncpa %s586, 1
    %588 = vsyncpa [#allocation6], 1
    %589 = vsyncpa [#allocation4], 1
    %s590 = scalar_lea.sflag [#allocation4], 1
    %591 = vsyncpa %s590, 1

</llo_original>
